<compile_context>
chip_gen: v7x
topology: tpu7x:2x2x1
jax: 0.10.0
libtpu: 0.0.40
codegen_flags: <defaults>
</compile_context>

<pallas_src>
import functools
import math

import jax
import jax.numpy as jnp
from jax.experimental import pallas as pl
from jax.experimental.pallas import tpu as pltpu


DEFAULT_MASK_VALUE = -1e30  # large finite negative: no -inf -> NaN risk


def _pick_block(total, target):
    """Largest tile <= target that divides `total`; falls back to full dim."""
    for cand in (target, 512, 256, 128, 64, 32, 16, 8):
        if cand <= total and total % cand == 0:
            return cand
    return total


# --------------------------------------------------------------------------
# Stage 1: QKV projection, output layout (B, H, T, D). Grid (B, T-tiles).
# Weight (H, C, 3D) and bias (H, 1, 3D) are VMEM-resident (constant index_map).
# --------------------------------------------------------------------------
def _qkv_proj_kernel(x_ref, w_ref, b_ref, q_ref, k_ref, v_ref,
                     *, scale, n_head, d_head):
    x = x_ref[0]                                              # (block_t, C)
    for h in range(n_head):                                   # static unroll
        w = w_ref[h]                                          # (C, 3D)
        b = b_ref[h].astype(jnp.float32)                      # (1, 3D)
        qkv = jnp.dot(x, w, preferred_element_type=jnp.float32) + b
        # Fold the 1/sqrt(D) attention scale into q (T*D work, not T*T).
        q_ref[0, h] = (qkv[:, :d_head] * scale).astype(q_ref.dtype)
        k_ref[0, h] = qkv[:, d_head:2 * d_head].astype(k_ref.dtype)
        v_ref[0, h] = qkv[:, 2 * d_head:].astype(v_ref.dtype)


# --------------------------------------------------------------------------
# Stage 2: flash attention + fused output projection.
# Grid: (B, num_q_tiles, H, num_kv_tiles); KV axis innermost.
# --------------------------------------------------------------------------
def _flash_attn_proj_kernel(q_ref, k_ref, v_ref, wproj_ref, bproj_ref, o_ref,
                            m_sc, l_sc, acc_sc, out_sc,
                            *, block_q, block_kv, mask_value):
    qi = pl.program_id(1)
    h = pl.program_id(2)
    ki = pl.program_id(3)
    nh = pl.num_programs(2)
    nkv = pl.num_programs(3)

    @pl.when(jnp.logical_and(h == 0, ki == 0))
    def _init_out():
        out_sc[...] = jnp.zeros_like(out_sc)

    @pl.when(ki == 0)
    def _init_head():
        m_sc[...] = jnp.full_like(m_sc, mask_value)
        l_sc[...] = jnp.zeros_like(l_sc)
        acc_sc[...] = jnp.zeros_like(acc_sc)

    q_start = qi * block_q
    kv_start = ki * block_kv
    # Tile classification: entirely-future tiles are skipped; only tiles that
    # straddle the diagonal pay for the iota/compare/select mask.
    visible = kv_start <= q_start + (block_q - 1)
    needs_mask = kv_start + (block_kv - 1) > q_start

    def attn_step(apply_mask):
        q = q_ref[0, 0]                                       # (block_q, D), pre-scaled
        k = k_ref[0, 0]                                       # (block_kv, D)
        v = v_ref[0, 0]                                       # (block_kv, D)
        s = jnp.dot(q, k.T, preferred_element_type=jnp.float32)  # (bq, bkv) f32
        if apply_mask:
            row = q_start + jax.lax.broadcasted_iota(jnp.int32, (block_q, block_kv), 0)
            col = kv_start + jax.lax.broadcasted_iota(jnp.int32, (block_q, block_kv), 1)
            s = jnp.where(col <= row, s, mask_value)
        m_prev = m_sc[...]
        m_new = jnp.maximum(m_prev, jnp.max(s, axis=-1, keepdims=True))
        alpha = jnp.exp(m_prev - m_new)                       # EUP
        p = jnp.exp(s - m_new)                                # EUP
        l_sc[...] = alpha * l_sc[...] + jnp.sum(p, axis=-1, keepdims=True)
        acc_sc[...] = alpha * acc_sc[...] + jnp.dot(
            p.astype(v.dtype), v, preferred_element_type=jnp.float32)
        m_sc[...] = m_new

    @pl.when(jnp.logical_and(visible, needs_mask))
    def _masked_step():
        attn_step(True)

    @pl.when(jnp.logical_and(visible, jnp.logical_not(needs_mask)))
    def _unmasked_step():
        attn_step(False)

    # Head finished: normalize and fold its slice of the output projection.
    @pl.when(ki == nkv - 1)
    def _fold_head():
        inv_l = pl.reciprocal(l_sc[...], approx=True)         # EUP slot
        y_h = (acc_sc[...] * inv_l).astype(wproj_ref.dtype)   # (block_q, D)
        out_sc[...] += jnp.dot(y_h, wproj_ref[h],
                               preferred_element_type=jnp.float32)

    # All heads done: single lane-dense (block_q, C) store.
    @pl.when(jnp.logical_and(h == nh - 1, ki == nkv - 1))
    def _finalize():
        o_ref[0] = (out_sc[...] + bproj_ref[...].astype(jnp.float32)
                    ).astype(o_ref.dtype)


# --------------------------------------------------------------------------
# Wrapper
# --------------------------------------------------------------------------
def causal_self_attention(x, wqkv, bqkv, wproj, bproj, n_head,
                          *, block_q=None, block_kv=None, block_t=None):
    """x: (B,T,C); wqkv: (C,3C); bqkv: (1,3C); wproj: (C,C); bproj: (1,C)."""
    B, T, C = x.shape
    H = n_head
    assert C % H == 0
    D = C // H

    block_t = _pick_block(T, block_t or 256)
    block_q = _pick_block(T, block_q or 128)
    block_kv = _pick_block(T, block_kv or 128)
    num_t, num_q, num_kv = T // block_t, T // block_q, T // block_kv
    scale = 1.0 / math.sqrt(D)

    # One-time host-side weight re-layout (layout plumbing, outside the kernels).
    wq = wqkv[:, 0 * C:1 * C].reshape(C, H, D).transpose(1, 0, 2)   # (H, C, D)
    wk = wqkv[:, 1 * C:2 * C].reshape(C, H, D).transpose(1, 0, 2)
    wv = wqkv[:, 2 * C:3 * C].reshape(C, H, D).transpose(1, 0, 2)
    w_cat = jnp.concatenate([wq, wk, wv], axis=-1)                  # (H, C, 3D)
    bq = bqkv[0, 0 * C:1 * C].reshape(H, 1, D)
    bk = bqkv[0, 1 * C:2 * C].reshape(H, 1, D)
    bv = bqkv[0, 2 * C:3 * C].reshape(H, 1, D)
    b_cat = jnp.concatenate([bq, bk, bv], axis=-1)                  # (H, 1, 3D)
    wproj_h = wproj.reshape(H, D, C)                                # rows per head

    # ---------------- Stage 1: QKV projection ----------------
    qkv_kernel = functools.partial(_qkv_proj_kernel, scale=scale,
                                   n_head=H, d_head=D)
    qkv_shape = jax.ShapeDtypeStruct((B, H, T, D), x.dtype)
    q, k, v = pl.pallas_call(
        qkv_kernel,
        out_shape=(qkv_shape, qkv_shape, qkv_shape),
        grid=(B, num_t),
        in_specs=[
            pl.BlockSpec((1, block_t, C), lambda b, t: (b, t, 0)),
            pl.BlockSpec((H, C, 3 * D), lambda b, t: (0, 0, 0)),   # resident
            pl.BlockSpec((H, 1, 3 * D), lambda b, t: (0, 0, 0)),   # resident
        ],
        out_specs=(
            pl.BlockSpec((1, H, block_t, D), lambda b, t: (b, 0, t, 0)),
            pl.BlockSpec((1, H, block_t, D), lambda b, t: (b, 0, t, 0)),
            pl.BlockSpec((1, H, block_t, D), lambda b, t: (b, 0, t, 0)),
        ),
        compiler_params=pltpu.CompilerParams(
            dimension_semantics=("parallel", "parallel")),
    )(x, w_cat, b_cat)

    # ---------------- Stage 2: flash attention + output projection ----------------
    flash_kernel = functools.partial(
        _flash_attn_proj_kernel, block_q=block_q, block_kv=block_kv,
        mask_value=DEFAULT_MASK_VALUE)

    def _last_visible(qi):
        # last KV tile index that contains any causally visible column
        return (qi * block_q + (block_q - 1)) // block_kv

    def kv_index_map(b, qi, h, ki):
        # Clamp future tiles to the last visible one: same block index as the
        # previous iteration -> Pallas skips the (useless) DMA entirely.
        return (b, h, jnp.minimum(ki, _last_visible(qi)), 0)

    out = pl.pallas_call(
        flash_kernel,
        out_shape=jax.ShapeDtypeStruct((B, T, C), x.dtype),
        grid=(B, num_q, H, num_kv),
        in_specs=[
            pl.BlockSpec((1, 1, block_q, D), lambda b, qi, h, ki: (b, h, qi, 0)),
            pl.BlockSpec((1, 1, block_kv, D), kv_index_map),
            pl.BlockSpec((1, 1, block_kv, D), kv_index_map),
            pl.BlockSpec((H, D, C), lambda b, qi, h, ki: (0, 0, 0)),  # resident
            pl.BlockSpec((1, C), lambda b, qi, h, ki: (0, 0)),        # resident
        ],
        out_specs=pl.BlockSpec((1, block_q, C), lambda b, qi, h, ki: (b, qi, 0)),
        scratch_shapes=[
            pltpu.VMEM((block_q, 1), jnp.float32),   # running max
            pltpu.VMEM((block_q, 1), jnp.float32),   # running sum
            pltpu.VMEM((block_q, D), jnp.float32),   # per-head attention accumulator
            pltpu.VMEM((block_q, C), jnp.float32),   # projected output accumulator
        ],
        compiler_params=pltpu.CompilerParams(
            dimension_semantics=("parallel", "parallel", "arbitrary", "arbitrary")),
    )(q, k, v, wproj_h, bproj)
    return out


# --------------------------------------------------------------------------
# Pure-JAX reference mirroring the PyTorch forward.
# --------------------------------------------------------------------------
def reference_attention(x, wqkv, bqkv, wproj, bproj, n_head):
    B, T, C = x.shape
    D = C // n_head
    qkv = x @ wqkv + bqkv
    q, k, v = jnp.split(qkv, 3, axis=-1)
    q = q.reshape(B, T, n_head, D).transpose(0, 2, 1, 3)
    k = k.reshape(B, T, n_head, D).transpose(0, 2, 1, 3)
    v = v.reshape(B, T, n_head, D).transpose(0, 2, 1, 3)
    s = jnp.einsum('bhtd,bhsd->bhts', q, k) / math.sqrt(D)
    causal = jnp.tril(jnp.ones((T, T), dtype=bool))
    s = jnp.where(causal[None, None], s, -jnp.inf)
    att = jax.nn.softmax(s, axis=-1)
    y = jnp.einsum('bhts,bhsd->bhtd', att, v)
    y = y.transpose(0, 2, 1, 3).reshape(B, T, C)
    return y @ wproj + bproj


def _make_params(key, C, n_layer, dtype=jnp.float32):
    k_wqkv, k_bqkv, k_wproj, k_bproj = jax.random.split(key, 4)
    wqkv = 0.02 * jax.random.normal(k_wqkv, (C, 3 * C), dtype=dtype)
    bqkv = 0.02 * jax.random.normal(k_bqkv, (1, 3 * C), dtype=dtype)
    proj_scale = 0.02 * (2 * n_layer) ** (-0.5)
    wproj = proj_scale * jax.random.normal(k_wproj, (C, C), dtype=dtype)
    bproj = 0.02 * jax.random.normal(k_bproj, (1, C), dtype=dtype)
    return wqkv, bqkv, wproj, bproj


if __name__ == "__main__":
    # Small config consistent with the module: B=2, T=8 (== block_size),
    # n_embd=32, n_head=4, n_layer=2.
    B, T, C, n_head, n_layer = 2, 8, 32, 4, 2

    key = jax.random.PRNGKey(0)
    k_x, k_params, k_x2, k_params2 = jax.random.split(key, 4)

    x = jax.random.normal(k_x, (B, T, C), dtype=jnp.float32)
    wqkv, bqkv, wproj, bproj = _make_params(k_params, C, n_layer)

    # ---- f32 correctness at module-consistent small shapes ----
    out = causal_self_attention(x, wqkv, bqkv, wproj, bproj, n_head)
    out = jax.block_until_ready(out)
    ref = reference_attention(x, wqkv, bqkv, wproj, bproj, n_head)
    assert out.shape == (B, T, C)
    assert jnp.allclose(out, ref, atol=1e-3, rtol=1e-3), (
        f"f32 max abs err = {jnp.max(jnp.abs(out - ref))}")

    # ---- exercise the tiled flash path (multiple q/kv tiles, masked /
    #      unmasked / skipped tiles, clamped KV index map) ----
    B2, T2, C2, H2 = 2, 128, 64, 4
    x2 = jax.random.normal(k_x2, (B2, T2, C2), dtype=jnp.float32)
    wqkv2, bqkv2, wproj2, bproj2 = _make_params(k_params2, C2, n_layer)
    out2 = causal_self_attention(x2, wqkv2, bqkv2, wproj2, bproj2, H2,
                                 block_q=64, block_kv=64)
    out2 = jax.block_until_ready(out2)
    ref2 = reference_attention(x2, wqkv2, bqkv2, wproj2, bproj2, H2)
    assert jnp.allclose(out2, ref2, atol=1e-3, rtol=1e-3), (
        f"tiled f32 max abs err = {jnp.max(jnp.abs(out2 - ref2))}")

    # ---- bf16 path (bf16 MXU inputs, f32 accumulation / softmax stats) ----
    x_bf = x.astype(jnp.bfloat16)
    wqkv_bf, bqkv_bf = wqkv.astype(jnp.bfloat16), bqkv.astype(jnp.bfloat16)
    wproj_bf, bproj_bf = wproj.astype(jnp.bfloat16), bproj.astype(jnp.bfloat16)
    out_bf = causal_self_attention(x_bf, wqkv_bf, bqkv_bf, wproj_bf, bproj_bf,
                                   n_head)
    out_bf = jax.block_until_ready(out_bf)
    ref_bf = reference_attention(
        x_bf.astype(jnp.float32), wqkv_bf.astype(jnp.float32),
        bqkv_bf.astype(jnp.float32), wproj_bf.astype(jnp.float32),
        bproj_bf.astype(jnp.float32), n_head)
    assert bool(jnp.all(jnp.isfinite(out_bf.astype(jnp.float32))))
    assert jnp.allclose(out_bf.astype(jnp.float32), ref_bf,
                        atol=3e-3, rtol=5e-2), (
        f"bf16 max abs err = {jnp.max(jnp.abs(out_bf.astype(jnp.float32) - ref_bf))}")

    print("KERNEL_OK")
</pallas_src>

<mosaic_0001>
module attributes {stable_mosaic.version = 11 : i64} {
  func.func @_qkv_proj_kernel(%arg0: i32, %arg1: i32, %arg2: memref<1x8x32xf32, #tpu.memory_space<vmem>>, %arg3: memref<4x32x24xf32, #tpu.memory_space<vmem>>, %arg4: memref<4x1x24xf32, #tpu.memory_space<vmem>>, %arg5: memref<1x4x8x8xf32, #tpu.memory_space<vmem>>, %arg6: memref<1x4x8x8xf32, #tpu.memory_space<vmem>>, %arg7: memref<1x4x8x8xf32, #tpu.memory_space<vmem>>) attributes {dimension_semantics = [#tpu.dimension_semantics<parallel>, #tpu.dimension_semantics<parallel>], iteration_bounds = array<i64: 2, 1>, scalar_prefetch = 0 : i64, scratch_operands = 0 : i64, tpu.core_type = #tpu.core_type<tc>, window_params = [{transform_indices = @transform_0, window_bounds = array<i64: 1, 8, 32>}, {pipeline_mode = #tpu.pipeline_mode<synchronous>, transform_indices = @transform_1, window_bounds = array<i64: 4, 32, 24>}, {pipeline_mode = #tpu.pipeline_mode<synchronous>, transform_indices = @transform_2, window_bounds = array<i64: 4, 1, 24>}, {transform_indices = @transform_3, window_bounds = array<i64: 1, 4, 8, 8>}, {transform_indices = @transform_4, window_bounds = array<i64: 1, 4, 8, 8>}, {transform_indices = @transform_5, window_bounds = array<i64: 1, 4, 8, 8>}]} {
    %c0 = arith.constant 0 : index
    %c0_0 = arith.constant 0 : index
    %c0_1 = arith.constant 0 : index
    %0 = vector.load %arg2[%c0, %c0_0, %c0_1] : memref<1x8x32xf32, #tpu.memory_space<vmem>>, vector<1x8x32xf32>
    %1 = vector.shape_cast %0 : vector<1x8x32xf32> to vector<8x32xf32>
    %c0_2 = arith.constant 0 : index
    %c0_3 = arith.constant 0 : index
    %c0_4 = arith.constant 0 : index
    %2 = vector.load %arg3[%c0_2, %c0_3, %c0_4] : memref<4x32x24xf32, #tpu.memory_space<vmem>>, vector<1x32x24xf32>
    %3 = vector.shape_cast %2 : vector<1x32x24xf32> to vector<32x24xf32>
    %c0_5 = arith.constant 0 : index
    %c0_6 = arith.constant 0 : index
    %c0_7 = arith.constant 0 : index
    %4 = vector.load %arg4[%c0_5, %c0_6, %c0_7] : memref<4x1x24xf32, #tpu.memory_space<vmem>>, vector<1x1x24xf32>
    %5 = vector.shape_cast %4 : vector<1x1x24xf32> to vector<1x24xf32>
    %cst = arith.constant dense<0.000000e+00> : vector<8x24xf32>
    %6 = tpu.matmul %1, %3, %cst {dimension_numbers = #tpu.dot_dimension_numbers<[1], [0], [0], [1], [0, 0, 1, 1], [], []>} : vector<8x32xf32>, vector<32x24xf32>, vector<8x24xf32> -> vector<8x24xf32>
    %7 = vector.broadcast %5 : vector<1x24xf32> to vector<8x24xf32>
    %8 = arith.addf %6, %7 : vector<8x24xf32>
    %9 = vector.extract_strided_slice %8 {offsets = [0, 0], sizes = [8, 8], strides = [1, 1]} : vector<8x24xf32> to vector<8x8xf32>
    %cst_8 = arith.constant 0.353553385 : f32
    %10 = vector.broadcast %cst_8 : f32 to vector<8x8xf32>
    %11 = arith.mulf %9, %10 : vector<8x8xf32>
    %c0_9 = arith.constant 0 : index
    %c0_10 = arith.constant 0 : index
    %c0_11 = arith.constant 0 : index
    %c0_12 = arith.constant 0 : index
    %12 = vector.load %arg5[%c0_9, %c0_10, %c0_11, %c0_12] : memref<1x4x8x8xf32, #tpu.memory_space<vmem>>, vector<1x1x8x8xf32>
    %13 = vector.shape_cast %12 : vector<1x1x8x8xf32> to vector<8x8xf32>
    %14 = vector.shape_cast %11 : vector<8x8xf32> to vector<1x1x8x8xf32>
    tpu.vector_store %arg5[%c0_9, %c0_10, %c0_11, %c0_12], %14 {strides = array<i32>} : memref<1x4x8x8xf32, #tpu.memory_space<vmem>>, vector<1x1x8x8xf32>,
    %15 = vector.extract_strided_slice %8 {offsets = [0, 8], sizes = [8, 8], strides = [1, 1]} : vector<8x24xf32> to vector<8x8xf32>
    %c0_13 = arith.constant 0 : index
    %c0_14 = arith.constant 0 : index
    %c0_15 = arith.constant 0 : index
    %c0_16 = arith.constant 0 : index
    %16 = vector.load %arg6[%c0_13, %c0_14, %c0_15, %c0_16] : memref<1x4x8x8xf32, #tpu.memory_space<vmem>>, vector<1x1x8x8xf32>
    %17 = vector.shape_cast %16 : vector<1x1x8x8xf32> to vector<8x8xf32>
    %18 = vector.shape_cast %15 : vector<8x8xf32> to vector<1x1x8x8xf32>
    tpu.vector_store %arg6[%c0_13, %c0_14, %c0_15, %c0_16], %18 {strides = array<i32>} : memref<1x4x8x8xf32, #tpu.memory_space<vmem>>, vector<1x1x8x8xf32>,
    %19 = vector.extract_strided_slice %8 {offsets = [0, 16], sizes = [8, 8], strides = [1, 1]} : vector<8x24xf32> to vector<8x8xf32>
    %c0_17 = arith.constant 0 : index
    %c0_18 = arith.constant 0 : index
    %c0_19 = arith.constant 0 : index
    %c0_20 = arith.constant 0 : index
    %20 = vector.load %arg7[%c0_17, %c0_18, %c0_19, %c0_20] : memref<1x4x8x8xf32, #tpu.memory_space<vmem>>, vector<1x1x8x8xf32>
    %21 = vector.shape_cast %20 : vector<1x1x8x8xf32> to vector<8x8xf32>
    %22 = vector.shape_cast %19 : vector<8x8xf32> to vector<1x1x8x8xf32>
    tpu.vector_store %arg7[%c0_17, %c0_18, %c0_19, %c0_20], %22 {strides = array<i32>} : memref<1x4x8x8xf32, #tpu.memory_space<vmem>>, vector<1x1x8x8xf32>,
    %c1 = arith.constant 1 : index
    %c0_21 = arith.constant 0 : index
    %c0_22 = arith.constant 0 : index
    %23 = vector.load %arg3[%c1, %c0_21, %c0_22] : memref<4x32x24xf32, #tpu.memory_space<vmem>>, vector<1x32x24xf32>
    %24 = vector.shape_cast %23 : vector<1x32x24xf32> to vector<32x24xf32>
    %c1_23 = arith.constant 1 : index
    %c0_24 = arith.constant 0 : index
    %c0_25 = arith.constant 0 : index
    %25 = vector.load %arg4[%c1_23, %c0_24, %c0_25] : memref<4x1x24xf32, #tpu.memory_space<vmem>>, vector<1x1x24xf32>
    %26 = vector.shape_cast %25 : vector<1x1x24xf32> to vector<1x24xf32>
    %cst_26 = arith.constant dense<0.000000e+00> : vector<8x24xf32>
    %27 = tpu.matmul %1, %24, %cst_26 {dimension_numbers = #tpu.dot_dimension_numbers<[1], [0], [0], [1], [0, 0, 1, 1], [], []>} : vector<8x32xf32>, vector<32x24xf32>, vector<8x24xf32> -> vector<8x24xf32>
    %28 = vector.broadcast %26 : vector<1x24xf32> to vector<8x24xf32>
    %29 = arith.addf %27, %28 : vector<8x24xf32>
    %30 = vector.extract_strided_slice %29 {offsets = [0, 0], sizes = [8, 8], strides = [1, 1]} : vector<8x24xf32> to vector<8x8xf32>
    %cst_27 = arith.constant 0.353553385 : f32
    %31 = vector.broadcast %cst_27 : f32 to vector<8x8xf32>
    %32 = arith.mulf %30, %31 : vector<8x8xf32>
    %c0_28 = arith.constant 0 : index
    %c1_29 = arith.constant 1 : index
    %c0_30 = arith.constant 0 : index
    %c0_31 = arith.constant 0 : index
    %33 = vector.load %arg5[%c0_28, %c1_29, %c0_30, %c0_31] : memref<1x4x8x8xf32, #tpu.memory_space<vmem>>, vector<1x1x8x8xf32>
    %34 = vector.shape_cast %33 : vector<1x1x8x8xf32> to vector<8x8xf32>
    %35 = vector.shape_cast %32 : vector<8x8xf32> to vector<1x1x8x8xf32>
    tpu.vector_store %arg5[%c0_28, %c1_29, %c0_30, %c0_31], %35 {strides = array<i32>} : memref<1x4x8x8xf32, #tpu.memory_space<vmem>>, vector<1x1x8x8xf32>,
    %36 = vector.extract_strided_slice %29 {offsets = [0, 8], sizes = [8, 8], strides = [1, 1]} : vector<8x24xf32> to vector<8x8xf32>
    %c0_32 = arith.constant 0 : index
    %c1_33 = arith.constant 1 : index
    %c0_34 = arith.constant 0 : index
    %c0_35 = arith.constant 0 : index
    %37 = vector.load %arg6[%c0_32, %c1_33, %c0_34, %c0_35] : memref<1x4x8x8xf32, #tpu.memory_space<vmem>>, vector<1x1x8x8xf32>
    %38 = vector.shape_cast %37 : vector<1x1x8x8xf32> to vector<8x8xf32>
    %39 = vector.shape_cast %36 : vector<8x8xf32> to vector<1x1x8x8xf32>
    tpu.vector_store %arg6[%c0_32, %c1_33, %c0_34, %c0_35], %39 {strides = array<i32>} : memref<1x4x8x8xf32, #tpu.memory_space<vmem>>, vector<1x1x8x8xf32>,
    %40 = vector.extract_strided_slice %29 {offsets = [0, 16], sizes = [8, 8], strides = [1, 1]} : vector<8x24xf32> to vector<8x8xf32>
    %c0_36 = arith.constant 0 : index
    %c1_37 = arith.constant 1 : index
    %c0_38 = arith.constant 0 : index
    %c0_39 = arith.constant 0 : index
    %41 = vector.load %arg7[%c0_36, %c1_37, %c0_38, %c0_39] : memref<1x4x8x8xf32, #tpu.memory_space<vmem>>, vector<1x1x8x8xf32>
    %42 = vector.shape_cast %41 : vector<1x1x8x8xf32> to vector<8x8xf32>
    %43 = vector.shape_cast %40 : vector<8x8xf32> to vector<1x1x8x8xf32>
    tpu.vector_store %arg7[%c0_36, %c1_37, %c0_38, %c0_39], %43 {strides = array<i32>} : memref<1x4x8x8xf32, #tpu.memory_space<vmem>>, vector<1x1x8x8xf32>,
    %c2 = arith.constant 2 : index
    %c0_40 = arith.constant 0 : index
    %c0_41 = arith.constant 0 : index
    %44 = vector.load %arg3[%c2, %c0_40, %c0_41] : memref<4x32x24xf32, #tpu.memory_space<vmem>>, vector<1x32x24xf32>
    %45 = vector.shape_cast %44 : vector<1x32x24xf32> to vector<32x24xf32>
    %c2_42 = arith.constant 2 : index
    %c0_43 = arith.constant 0 : index
    %c0_44 = arith.constant 0 : index
    %46 = vector.load %arg4[%c2_42, %c0_43, %c0_44] : memref<4x1x24xf32, #tpu.memory_space<vmem>>, vector<1x1x24xf32>
    %47 = vector.shape_cast %46 : vector<1x1x24xf32> to vector<1x24xf32>
    %cst_45 = arith.constant dense<0.000000e+00> : vector<8x24xf32>
    %48 = tpu.matmul %1, %45, %cst_45 {dimension_numbers = #tpu.dot_dimension_numbers<[1], [0], [0], [1], [0, 0, 1, 1], [], []>} : vector<8x32xf32>, vector<32x24xf32>, vector<8x24xf32> -> vector<8x24xf32>
    %49 = vector.broadcast %47 : vector<1x24xf32> to vector<8x24xf32>
    %50 = arith.addf %48, %49 : vector<8x24xf32>
    %51 = vector.extract_strided_slice %50 {offsets = [0, 0], sizes = [8, 8], strides = [1, 1]} : vector<8x24xf32> to vector<8x8xf32>
    %cst_46 = arith.constant 0.353553385 : f32
    %52 = vector.broadcast %cst_46 : f32 to vector<8x8xf32>
    %53 = arith.mulf %51, %52 : vector<8x8xf32>
    %c0_47 = arith.constant 0 : index
    %c2_48 = arith.constant 2 : index
    %c0_49 = arith.constant 0 : index
    %c0_50 = arith.constant 0 : index
    %54 = vector.load %arg5[%c0_47, %c2_48, %c0_49, %c0_50] : memref<1x4x8x8xf32, #tpu.memory_space<vmem>>, vector<1x1x8x8xf32>
    %55 = vector.shape_cast %54 : vector<1x1x8x8xf32> to vector<8x8xf32>
    %56 = vector.shape_cast %53 : vector<8x8xf32> to vector<1x1x8x8xf32>
    tpu.vector_store %arg5[%c0_47, %c2_48, %c0_49, %c0_50], %56 {strides = array<i32>} : memref<1x4x8x8xf32, #tpu.memory_space<vmem>>, vector<1x1x8x8xf32>,
    %57 = vector.extract_strided_slice %50 {offsets = [0, 8], sizes = [8, 8], strides = [1, 1]} : vector<8x24xf32> to vector<8x8xf32>
    %c0_51 = arith.constant 0 : index
    %c2_52 = arith.constant 2 : index
    %c0_53 = arith.constant 0 : index
    %c0_54 = arith.constant 0 : index
    %58 = vector.load %arg6[%c0_51, %c2_52, %c0_53, %c0_54] : memref<1x4x8x8xf32, #tpu.memory_space<vmem>>, vector<1x1x8x8xf32>
    %59 = vector.shape_cast %58 : vector<1x1x8x8xf32> to vector<8x8xf32>
    %60 = vector.shape_cast %57 : vector<8x8xf32> to vector<1x1x8x8xf32>
    tpu.vector_store %arg6[%c0_51, %c2_52, %c0_53, %c0_54], %60 {strides = array<i32>} : memref<1x4x8x8xf32, #tpu.memory_space<vmem>>, vector<1x1x8x8xf32>,
    %61 = vector.extract_strided_slice %50 {offsets = [0, 16], sizes = [8, 8], strides = [1, 1]} : vector<8x24xf32> to vector<8x8xf32>
    %c0_55 = arith.constant 0 : index
    %c2_56 = arith.constant 2 : index
    %c0_57 = arith.constant 0 : index
    %c0_58 = arith.constant 0 : index
    %62 = vector.load %arg7[%c0_55, %c2_56, %c0_57, %c0_58] : memref<1x4x8x8xf32, #tpu.memory_space<vmem>>, vector<1x1x8x8xf32>
    %63 = vector.shape_cast %62 : vector<1x1x8x8xf32> to vector<8x8xf32>
    %64 = vector.shape_cast %61 : vector<8x8xf32> to vector<1x1x8x8xf32>
    tpu.vector_store %arg7[%c0_55, %c2_56, %c0_57, %c0_58], %64 {strides = array<i32>} : memref<1x4x8x8xf32, #tpu.memory_space<vmem>>, vector<1x1x8x8xf32>,
    %c3 = arith.constant 3 : index
    %c0_59 = arith.constant 0 : index
    %c0_60 = arith.constant 0 : index
    %65 = vector.load %arg3[%c3, %c0_59, %c0_60] : memref<4x32x24xf32, #tpu.memory_space<vmem>>, vector<1x32x24xf32>
    %66 = vector.shape_cast %65 : vector<1x32x24xf32> to vector<32x24xf32>
    %c3_61 = arith.constant 3 : index
    %c0_62 = arith.constant 0 : index
    %c0_63 = arith.constant 0 : index
    %67 = vector.load %arg4[%c3_61, %c0_62, %c0_63] : memref<4x1x24xf32, #tpu.memory_space<vmem>>, vector<1x1x24xf32>
    %68 = vector.shape_cast %67 : vector<1x1x24xf32> to vector<1x24xf32>
    %cst_64 = arith.constant dense<0.000000e+00> : vector<8x24xf32>
    %69 = tpu.matmul %1, %66, %cst_64 {dimension_numbers = #tpu.dot_dimension_numbers<[1], [0], [0], [1], [0, 0, 1, 1], [], []>} : vector<8x32xf32>, vector<32x24xf32>, vector<8x24xf32> -> vector<8x24xf32>
    %70 = vector.broadcast %68 : vector<1x24xf32> to vector<8x24xf32>
    %71 = arith.addf %69, %70 : vector<8x24xf32>
    %72 = vector.extract_strided_slice %71 {offsets = [0, 0], sizes = [8, 8], strides = [1, 1]} : vector<8x24xf32> to vector<8x8xf32>
    %cst_65 = arith.constant 0.353553385 : f32
    %73 = vector.broadcast %cst_65 : f32 to vector<8x8xf32>
    %74 = arith.mulf %72, %73 : vector<8x8xf32>
    %c0_66 = arith.constant 0 : index
    %c3_67 = arith.constant 3 : index
    %c0_68 = arith.constant 0 : index
    %c0_69 = arith.constant 0 : index
    %75 = vector.load %arg5[%c0_66, %c3_67, %c0_68, %c0_69] : memref<1x4x8x8xf32, #tpu.memory_space<vmem>>, vector<1x1x8x8xf32>
    %76 = vector.shape_cast %75 : vector<1x1x8x8xf32> to vector<8x8xf32>
    %77 = vector.shape_cast %74 : vector<8x8xf32> to vector<1x1x8x8xf32>
    tpu.vector_store %arg5[%c0_66, %c3_67, %c0_68, %c0_69], %77 {strides = array<i32>} : memref<1x4x8x8xf32, #tpu.memory_space<vmem>>, vector<1x1x8x8xf32>,
    %78 = vector.extract_strided_slice %71 {offsets = [0, 8], sizes = [8, 8], strides = [1, 1]} : vector<8x24xf32> to vector<8x8xf32>
    %c0_70 = arith.constant 0 : index
    %c3_71 = arith.constant 3 : index
    %c0_72 = arith.constant 0 : index
    %c0_73 = arith.constant 0 : index
    %79 = vector.load %arg6[%c0_70, %c3_71, %c0_72, %c0_73] : memref<1x4x8x8xf32, #tpu.memory_space<vmem>>, vector<1x1x8x8xf32>
    %80 = vector.shape_cast %79 : vector<1x1x8x8xf32> to vector<8x8xf32>
    %81 = vector.shape_cast %78 : vector<8x8xf32> to vector<1x1x8x8xf32>
    tpu.vector_store %arg6[%c0_70, %c3_71, %c0_72, %c0_73], %81 {strides = array<i32>} : memref<1x4x8x8xf32, #tpu.memory_space<vmem>>, vector<1x1x8x8xf32>,
    %82 = vector.extract_strided_slice %71 {offsets = [0, 16], sizes = [8, 8], strides = [1, 1]} : vector<8x24xf32> to vector<8x8xf32>
    %c0_74 = arith.constant 0 : index
    %c3_75 = arith.constant 3 : index
    %c0_76 = arith.constant 0 : index
    %c0_77 = arith.constant 0 : index
    %83 = vector.load %arg7[%c0_74, %c3_75, %c0_76, %c0_77] : memref<1x4x8x8xf32, #tpu.memory_space<vmem>>, vector<1x1x8x8xf32>
    %84 = vector.shape_cast %83 : vector<1x1x8x8xf32> to vector<8x8xf32>
    %85 = vector.shape_cast %82 : vector<8x8xf32> to vector<1x1x8x8xf32>
    tpu.vector_store %arg7[%c0_74, %c3_75, %c0_76, %c0_77], %85 {strides = array<i32>} : memref<1x4x8x8xf32, #tpu.memory_space<vmem>>, vector<1x1x8x8xf32>,
    return
  }
  func.func @transform_0(%arg0: i32, %arg1: i32) -> (i32, i32, i32) {
    %c0_i32 = arith.constant 0 : i32
    %c0_i32_0 = arith.constant 0 : i32
    return %arg0, %arg1, %c0_i32 : i32, i32, i32
  }
  func.func @transform_1(%arg0: i32, %arg1: i32) -> (i32, i32, i32) {
    %c0_i32 = arith.constant 0 : i32
    %c0_i32_0 = arith.constant 0 : i32
    %c0_i32_1 = arith.constant 0 : i32
    %c0_i32_2 = arith.constant 0 : i32
    return %c0_i32, %c0_i32_0, %c0_i32_1 : i32, i32, i32
  }
  func.func @transform_2(%arg0: i32, %arg1: i32) -> (i32, i32, i32) {
    %c0_i32 = arith.constant 0 : i32
    %c0_i32_0 = arith.constant 0 : i32
    %c0_i32_1 = arith.constant 0 : i32
    %c0_i32_2 = arith.constant 0 : i32
    return %c0_i32, %c0_i32_0, %c0_i32_1 : i32, i32, i32
  }
  func.func @transform_3(%arg0: i32, %arg1: i32) -> (i32, i32, i32, i32) {
    %c0_i32 = arith.constant 0 : i32
    %c0_i32_0 = arith.constant 0 : i32
    %c0_i32_1 = arith.constant 0 : i32
    return %arg0, %c0_i32, %arg1, %c0_i32_0 : i32, i32, i32, i32
  }
  func.func @transform_4(%arg0: i32, %arg1: i32) -> (i32, i32, i32, i32) {
    %c0_i32 = arith.constant 0 : i32
    %c0_i32_0 = arith.constant 0 : i32
    %c0_i32_1 = arith.constant 0 : i32
    return %arg0, %c0_i32, %arg1, %c0_i32_0 : i32, i32, i32, i32
  }
  func.func @transform_5(%arg0: i32, %arg1: i32) -> (i32, i32, i32, i32) {
    %c0_i32 = arith.constant 0 : i32
    %c0_i32_0 = arith.constant 0 : i32
    %c0_i32_1 = arith.constant 0 : i32
    return %arg0, %c0_i32, %arg1, %c0_i32_0 : i32, i32, i32, i32
  }
}

</mosaic_0001>

<llo_original>
// kernel: tpu_custom_call.1
$region0: #{tpu_custom_call.1}
  #allocation0 [shape = 'u32[]', space=smem, size = 0x4, offset = 0x4, fixed_abs, tag = 'smem constant byte address 0x4 - core index']
  #allocation1 [shape = 'u32[144,128]{1,0:T(1,128)}', space=vmem, size = 0x12000, scoped, tag = 'internal scratch']
  %s0 = inlined_call_operand.vmem [shape: f32[2,8,32], index: 0, kind: input, shape index: {}]
  %s1 = inlined_call_operand.vmem [shape: f32[4,32,24], index: 1, kind: input, shape index: {}]
  %s2 = inlined_call_operand.vmem [shape: f32[4,1,24], index: 2, kind: input, shape index: {}]
  %s3 = inlined_call_operand.hbm [shape: f32[2,4,8,8], index: 3, kind: output, shape index: {0}]
  %s4 = inlined_call_operand.hbm [shape: f32[2,4,8,8], index: 4, kind: output, shape index: {1}]
  %s5 = inlined_call_operand.hbm [shape: f32[2,4,8,8], index: 5, kind: output, shape index: {2}]
  %6 = xla_tuple %s3, %s4, %s5
  %s7 = sld [smem:[#allocation0]]
  $region61: #{tpu_custom_call.1} parent=0
    _
  %s9 = ssub.s32 1, %s7
  %s10 = scalar_select 0, %s9, %s7
  $region1: #{tpu_custom_call.1} parent=0
    #allocation2 [shape = 'u8[32768]{0}', space=vmem, size = 0x8000, scoped, tag = 'output window, operand 0']
    #allocation3 [shape = 's32[2]{0}', space=sflag, size = 0x8, scoped, tag = 'scoped memory for tpu_custom_call.1']
    #allocation4 [shape = 'u8[32768]{0}', space=vmem, size = 0x8000, scoped, tag = 'output window, operand 1']
    #allocation5 [shape = 's32[2]{0}', space=sflag, size = 0x8, scoped, tag = 'scoped memory for tpu_custom_call.1']
    #allocation6 [shape = 'u8[32768]{0}', space=vmem, size = 0x8000, scoped, tag = 'output window, operand 2']
    %11 = vsyncpa [#allocation3], 0
    %s12 = scalar_lea.sflag [#allocation3], 1
    %13 = vsyncpa %s12, 0
    %14 = vsyncpa [#allocation5], 0
    %s15 = scalar_lea.sflag [#allocation5], 1
    %16 = vsyncpa %s15, 0
    loop: start=0, step=1, limit=4
    $region2: #{tpu_custom_call.1} parent=1 // loop_pre_header
      _
    $region3: #{tpu_custom_call.1} parent=1 // loop_header
      %s18 = sphi 0, %s22
      %p19 = scmp.ge.s32.totalorder %s18, 4
      %s25 = sphi 0, %s37
      %s26 = sphi 0, %s33
      %s27 = sphi 0, %s25
      %s28 = sphi 0, %s26
      %s29 = sphi 0, %s27
      %s30 = sphi 0, %s28
      %s42 = sphi 0, %s44
      %s45 = sphi 0, %s42
      %s46 = sphi 0, %s45
      %s62 = sphi 0, %s46
      %s66 = sphi 0, %s66
      %s68 = sphi 0, %s66
      %s69 = sphi 0, %s68
      %s83 = sphi 0, %s69
      %s87 = sphi 0, %s87
      %s89 = sphi 0, %s87
      %s90 = sphi 0, %s89
      %s104 = sphi 0, %s90
      %s112 = sphi 0, %s114
      %s115 = sphi 0, %s112
      %s116 = sphi 0, %s115
      %s132 = sphi 0, %s116
      %s140 = sphi 0, %s142
      %s143 = sphi 0, %s140
      %s144 = sphi 0, %s143
      %s160 = sphi 0, %s144
      %s168 = sphi 0, %s170
      %s171 = sphi 0, %s168
      %s172 = sphi 0, %s171
      %s188 = sphi 0, %s172
    $region4: #{tpu_custom_call.1} parent=1 // loop_header_branch
      %21 = sbr.rel (%p19) target = $region8
    $region5: #{tpu_custom_call.1} parent=1 // loop_body
      %s23 = ssub.s32 %s18, 1
      %s24 = ssub.s32 %s18, 2
      %s31 = sadd.s32 1, %s26
      %p32 = scmp.ge.s32.totalorder %s31, 1
      %s33 = scalar_select %p32, 0, %s31
      %s34 = sadd.s32 1, %s25
      %s35 = scalar_select %p32, %s34, %s25
      %p36 = scmp.ge.s32.totalorder %s35, 2
      %s37 = scalar_select %p36, 0, %s35
      %s38 = ssub.s32 %s25, %s37
      %s39 = ssub.s32 %s26, %s33
      %s40 = sor.u32 %s38, %s39
      %p41 = scmp.eq.s32.totalorder %s40, 0
      %s43 = sadd.s32 %s42, 1
      %s44 = scalar_select %p41, %s42, %s43
      %p47 = pneg %p41
      %p48 = scmp.eq.s32.totalorder %s18, 1
      %p49 = por %p47, %p48
      %p50 = scmp.ne.s32.totalorder %s42, %s45
      %p51 = scmp.eq.s32.totalorder %s18, 0
      %p52 = por %p50, %p51
      %p53 = scmp.ne.s32.totalorder %s42, %s45
      %p54 = scmp.eq.s32.totalorder %s23, 1
      %p55 = por %p53, %p54
      %p56 = scmp.ne.s32.totalorder %s45, %s46
      %p57 = scmp.eq.s32.totalorder %s23, 0
      %p58 = por %p56, %p57
      %p59 = scmp.ne.s32.totalorder %s45, %s46
      %p60 = scmp.eq.s32.totalorder %s24, 1
      %p61 = por %p59, %p60
      %p63 = scmp.ne.s32.totalorder %s46, %s62
      %p64 = scmp.eq.s32.totalorder %s24, 0
      %p65 = por %p63, %p64
      %s67 = sadd.s32 %s66, 1
      %p70 = scmp.eq.s32.totalorder %s18, 1
      %p71 = scmp.ne.s32.totalorder %s66, %s68
      %p72 = scmp.eq.s32.totalorder %s18, 0
      %p73 = por %p71, %p72
      %p74 = scmp.ne.s32.totalorder %s66, %s68
      %p75 = scmp.eq.s32.totalorder %s23, 1
      %p76 = por %p74, %p75
      %p77 = scmp.ne.s32.totalorder %s68, %s69
      %p78 = scmp.eq.s32.totalorder %s23, 0
      %p79 = por %p77, %p78
      %p80 = scmp.ne.s32.totalorder %s68, %s69
      %p81 = scmp.eq.s32.totalorder %s24, 1
      %p82 = por %p80, %p81
      %p84 = scmp.ne.s32.totalorder %s69, %s83
      %p85 = scmp.eq.s32.totalorder %s24, 0
      %p86 = por %p84, %p85
      %s88 = sadd.s32 %s87, 1
      %p91 = scmp.eq.s32.totalorder %s18, 1
      %p92 = scmp.ne.s32.totalorder %s87, %s89
      %p93 = scmp.eq.s32.totalorder %s18, 0
      %p94 = por %p92, %p93
      %p95 = scmp.ne.s32.totalorder %s87, %s89
      %p96 = scmp.eq.s32.totalorder %s23, 1
      %p97 = por %p95, %p96
      %p98 = scmp.ne.s32.totalorder %s89, %s90
      %p99 = scmp.eq.s32.totalorder %s23, 0
      %p100 = por %p98, %p99
      %p101 = scmp.ne.s32.totalorder %s89, %s90
      %p102 = scmp.eq.s32.totalorder %s24, 1
      %p103 = por %p101, %p102
      %p105 = scmp.ne.s32.totalorder %s90, %s104
      %p106 = scmp.eq.s32.totalorder %s24, 0
      %p107 = por %p105, %p106
      %s108 = ssub.s32 %s25, %s37
      %s109 = ssub.s32 %s26, %s33
      %s110 = sor.u32 %s108, %s109
      %p111 = scmp.eq.s32.totalorder %s110, 0
      %s113 = sadd.s32 %s112, 1
      %s114 = scalar_select %p111, %s112, %s113
      %p117 = pneg %p111
      %p118 = scmp.eq.s32.totalorder %s18, 1
      %p119 = por %p117, %p118
      %p120 = scmp.ne.s32.totalorder %s112, %s115
      %p121 = scmp.eq.s32.totalorder %s18, 0
      %p122 = por %p120, %p121
      %p123 = scmp.ne.s32.totalorder %s112, %s115
      %p124 = scmp.eq.s32.totalorder %s23, 1
      %p125 = por %p123, %p124
      %p126 = scmp.ne.s32.totalorder %s115, %s116
      %p127 = scmp.eq.s32.totalorder %s23, 0
      %p128 = por %p126, %p127
      %p129 = scmp.ne.s32.totalorder %s115, %s116
      %p130 = scmp.eq.s32.totalorder %s24, 1
      %p131 = por %p129, %p130
      %p133 = scmp.ne.s32.totalorder %s116, %s132
      %p134 = scmp.eq.s32.totalorder %s24, 0
      %p135 = por %p133, %p134
      %s136 = ssub.s32 %s25, %s37
      %s137 = ssub.s32 %s26, %s33
      %s138 = sor.u32 %s136, %s137
      %p139 = scmp.eq.s32.totalorder %s138, 0
      %s141 = sadd.s32 %s140, 1
      %s142 = scalar_select %p139, %s140, %s141
      %p145 = pneg %p139
      %p146 = scmp.eq.s32.totalorder %s18, 1
      %p147 = por %p145, %p146
      %p148 = scmp.ne.s32.totalorder %s140, %s143
      %p149 = scmp.eq.s32.totalorder %s18, 0
      %p150 = por %p148, %p149
      %p151 = scmp.ne.s32.totalorder %s140, %s143
      %p152 = scmp.eq.s32.totalorder %s23, 1
      %p153 = por %p151, %p152
      %p154 = scmp.ne.s32.totalorder %s143, %s144
      %p155 = scmp.eq.s32.totalorder %s23, 0
      %p156 = por %p154, %p155
      %p157 = scmp.ne.s32.totalorder %s143, %s144
      %p158 = scmp.eq.s32.totalorder %s24, 1
      %p159 = por %p157, %p158
      %p161 = scmp.ne.s32.totalorder %s144, %s160
      %p162 = scmp.eq.s32.totalorder %s24, 0
      %p163 = por %p161, %p162
      %s164 = ssub.s32 %s25, %s37
      %s165 = ssub.s32 %s26, %s33
      %s166 = sor.u32 %s164, %s165
      %p167 = scmp.eq.s32.totalorder %s166, 0
      %s169 = sadd.s32 %s168, 1
      %s170 = scalar_select %p167, %s168, %s169
      %p173 = pneg %p167
      %p174 = scmp.eq.s32.totalorder %s18, 1
      %p175 = por %p173, %p174
      %p176 = scmp.ne.s32.totalorder %s168, %s171
      %p177 = scmp.eq.s32.totalorder %s18, 0
      %p178 = por %p176, %p177
      %p179 = scmp.ne.s32.totalorder %s168, %s171
      %p180 = scmp.eq.s32.totalorder %s23, 1
      %p181 = por %p179, %p180
      %p182 = scmp.ne.s32.totalorder %s171, %s172
      %p183 = scmp.eq.s32.totalorder %s23, 0
      %p184 = por %p182, %p183
      %p185 = scmp.ne.s32.totalorder %s171, %s172
      %p186 = scmp.eq.s32.totalorder %s24, 1
      %p187 = por %p185, %p186
      %p189 = scmp.ne.s32.totalorder %s172, %s188
      %p190 = scmp.eq.s32.totalorder %s24, 0
      %p191 = por %p189, %p190
      %p192 = scmp.le.s32.totalorder 1, %s18
      %p193 = scmp.lt.s32.totalorder %s18, 3
      %p194 = pnand %p192, %p193
      %p195 = pneg %p194
      // Predicated region
      $region9: #{tpu_custom_call.1} parent=5 // pred_check
        _
      $region10: #{tpu_custom_call.1} parent=5 // pred_check_branch
        %197 = sbr.rel (%p194) target = $region12
      $region11: #{tpu_custom_call.1} parent=5 // pred_region
        %s198 = ssub.s32 %s18, 1
        // Predicated region
        $region13: #{tpu_custom_call.1} parent=11 // pred_check
          %p199 = pneg %p79
        $region14: #{tpu_custom_call.1} parent=11 // pred_check_branch
          %201 = sbr.rel (%p199) target = $region16
        $region15: #{tpu_custom_call.1} parent=11 // pred_region
          _
        $region16: #{tpu_custom_call.1} parent=11 // pred_fallthru
          _
        // Predicated region
        $region17: #{tpu_custom_call.1} parent=11 // pred_check
          %p202 = pneg %p100
        $region18: #{tpu_custom_call.1} parent=11 // pred_check_branch
          %204 = sbr.rel (%p202) target = $region20
        $region19: #{tpu_custom_call.1} parent=11 // pred_region
          _
        $region20: #{tpu_custom_call.1} parent=11 // pred_fallthru
          _
      $region12: #{tpu_custom_call.1} parent=5 // pred_fallthru
        _
      %p205 = scmp.lt.s32.totalorder %s18, 2
      // Predicated region
      $region21: #{tpu_custom_call.1} parent=5 // pred_check
        %p206 = pneg %p205
      $region22: #{tpu_custom_call.1} parent=5 // pred_check_branch
        %208 = sbr.rel (%p206) target = $region24
      $region23: #{tpu_custom_call.1} parent=5 // pred_region
        // Predicated region
        $region25: #{tpu_custom_call.1} parent=23 // pred_check
          %p209 = pneg %p52
        $region26: #{tpu_custom_call.1} parent=23 // pred_check_branch
          %211 = sbr.rel (%p209) target = $region28
        $region27: #{tpu_custom_call.1} parent=23 // pred_region
          %p212 = scmp.lt.s32.totalorder %s25, 1
          %s213 = scalar_select %p212, %s25, 1
          %p214 = scmp.lt.s32.totalorder %s26, 0
          %s215 = scalar_select %p214, %s26, 0
          %s216 = sadd.s32 %s215, %s213
          %s217 = smul.addr %s216, 8
          %s218 = scalar_lea.vmem %s0, %s217
        $region28: #{tpu_custom_call.1} parent=23 // pred_fallthru
          _
      $region24: #{tpu_custom_call.1} parent=5 // pred_fallthru
        _
      %p219 = scmp.le.s32.totalorder 1, %s18
      %p220 = scmp.lt.s32.totalorder %s18, 3
      %p221 = pnand %p219, %p220
      %p222 = pneg %p221
      // Predicated region
      $region29: #{tpu_custom_call.1} parent=5 // pred_check
        _
      $region30: #{tpu_custom_call.1} parent=5 // pred_check_branch
        %224 = sbr.rel (%p221) target = $region32
      $region31: #{tpu_custom_call.1} parent=5 // pred_region
        %s225 = ssub.s32 %s18, 1
        %p226 = scmp.lt.s32.totalorder %s27, 1
        %s227 = scalar_select %p226, %s27, 1
        %p228 = scmp.lt.s32.totalorder %s28, 0
        %s229 = scalar_select %p228, %s28, 0
        %s230 = sadd.s32 %s229, %s227
        %s231 = smul.addr %s230, 8
        %s232 = scalar_lea.vmem %s0, %s231
        %p233 = pneg %p58
        %p234 = pneg %p55
        %p235 = pneg %p79
        %p236 = pneg %p76
        %p237 = pneg %p100
        %p238 = pneg %p97
        %p239 = pneg %p128
        %p240 = pneg %p125
        %s241 = sand.u32 %s115, 1
        %s242 = scalar_lea.sflag [#allocation3], %s241
        %s243 = sand.u32 %s115, 1
        %s244 = smul.addr %s243, 32
        %s245 = scalar_lea.vmem [#allocation2], %s244
        %p246 = pneg %p156
        %p247 = pneg %p153
        %s248 = sand.u32 %s23, 1
        %s249 = scalar_lea.sflag [#allocation5], %s248
        %s250 = sand.u32 %s143, 1
        %s251 = smul.addr %s250, 32
        %s252 = scalar_lea.vmem [#allocation4], %s251
        %p253 = pneg %p184
        %p254 = pneg %p181
        %s255 = sand.u32 %s23, 1
        %s256 = scalar_lea.sflag [#allocation5], %s255
        %s257 = sand.u32 %s171, 1
        %s258 = smul.addr %s257, 32
        %s259 = scalar_lea.vmem [#allocation6], %s258
        %p260 = scmp.lt.s32.totalorder %s27, 1
        %s261 = scalar_select %p260, %s27, 1
        %p262 = scmp.lt.s32.totalorder %s28, 0
        %s263 = scalar_select %p262, %s28, 0
        %s264 = sadd.s32 %s263, %s261
        %s265 = smul.addr %s264, 8
        %s266 = scalar_lea.vmem %s0, %s265
        %v267 = vld [vmem:[%s266] sm:$0xff]
        %v268 = vld [vmem:[%s1] sm:$0xff]
        %v269 = vld [vmem:[%s1 + $0x8] sm:$0xff]
        %v270 = vld [vmem:[%s1 + $0x10] sm:$0xff]
        %v271 = vld [vmem:[%s1 + $0x18] sm:$0xff]
        %v272 = vld [vmem:[%s2] sm:$0x1]
        %v274 = vlaneseq
        %v275 = vshrl.u32 %v274, 7
        %v276 = vsub.s32 0, %v275
        %v277 = vrot.slane %v272, %v276
        %vm279 = vcmask 261120
        %v281 = vsel %vm279, %v267, 0
        %283 = vmatprep.subr.mxu0 0.0
        %284 = vmatpush1.msra.mxu0 %v268
        %285 = vmatprep.subr.mxu0 0.0
        %286 = vmatpush1.msra.mxu0 %v269
        %287 = vmatprep.subr.mxu0 0.0
        %288 = vmatpush1.msra.mxu0 %v270
        %289 = vmatprep.subr.mxu0 0.0
        %290 = vmatpush1.msra.mxu0 %v271
        %291 = vmatprep.subr.mxu0 0.0
        %292 = vmatpush1.msra.mxu0 0.0
        %293 = vmatprep.subr.mxu0 0.0
        %294 = vmatpush1.msra.mxu0 0.0
        %295 = vmatprep.subr.mxu0 0.0
        %296 = vmatpush1.msra.mxu0 0.0
        %297 = vmatprep.subr.mxu0 0.0
        %298 = vmatpush1.msra.mxu0 0.0
        %299 = vmatprep.subr.mxu0 0.0
        %300 = vmatpush1.msra.mxu0 0.0
        %301 = vmatprep.subr.mxu0 0.0
        %302 = vmatpush1.msra.mxu0 0.0
        %303 = vmatprep.subr.mxu0 0.0
        %304 = vmatpush1.msra.mxu0 0.0
        %305 = vmatprep.subr.mxu0 0.0
        %306 = vmatpush1.msra.mxu0 0.0
        %307 = vmatprep.subr.mxu0 0.0
        %308 = vmatpush1.msra.mxu0 0.0
        %309 = vmatprep.subr.mxu0 0.0
        %310 = vmatpush1.msra.mxu0 0.0
        %311 = vmatprep.subr.mxu0 0.0
        %312 = vmatpush1.msra.mxu0 0.0
        %313 = vmatprep.subr.mxu0 0.0
        %314 = vmatpush1.msra.mxu0 0.0
        %315 = vmatprep.subr.mxu0 0.0
        %316 = vmatpush1.msra.mxu0 0.0
        %317 = vmatprep.subr.mxu0 0.0
        %318 = vmatpush1.msra.mxu0 0.0
        %319 = vmatprep.subr.mxu0 0.0
        %320 = vmatpush1.msra.mxu0 0.0
        %321 = vmatprep.subr.mxu0 0.0
        %322 = vmatpush1.msra.mxu0 0.0
        %323 = vmatprep.subr.mxu0 0.0
        %324 = vmatpush1.msra.mxu0 0.0
        %325 = vmatprep.subr.mxu0 0.0
        %326 = vmatpush1.msra.mxu0 0.0
        %327 = vmatprep.subr.mxu0 0.0
        %328 = vmatpush1.msra.mxu0 0.0
        %329 = vmatprep.subr.mxu0 0.0
        %330 = vmatpush1.msra.mxu0 0.0
        %331 = vmatprep.subr.mxu0 0.0
        %332 = vmatpush1.msra.mxu0 0.0
        %333 = vmatprep.subr.mxu0 0.0
        %334 = vmatpush1.msra.mxu0 0.0
        %335 = vmatprep.subr.mxu0 0.0
        %336 = vmatpush1.msra.mxu0 0.0
        %337 = vmatprep.subr.mxu0 0.0
        %338 = vmatpush1.msra.mxu0 0.0
        %339 = vmatprep.subr.mxu0 0.0
        %340 = vmatpush1.msra.mxu0 0.0
        %341 = vmatprep.subr.mxu0 0.0
        %342 = vmatpush1.msra.mxu0 0.0
        %343 = vmatprep.subr.mxu0 0.0
        %344 = vmatpush1.msra.mxu0 0.0
        %345 = vmatprep.subr.mxu0 0.0
        %346 = vmatpush1.msra.mxu0 0.0
        %347 = vmatprep.mubr.f32.mxu0 0.0
        %348 = vmatmul.mubr.f32.gmra.mrb[0].mxu0 %v281
        %v349 = vpop.f32.mrb[0].mxu0
        %v350 = vadd.f32 %v277, %v349
        %v351 = vpop.f32.mrb[0].mxu0
        %352 = vdwg.mxu0
        %v353 = vmul.f32 %v350, 0.35355338
        %vm354 = vcmask 64512
        %355 = vst.msk [vmem:[%s245] sm:$0xff] %vm354, %v353
        %357 = vrot.lane.b32.xlu0 %v350, 120
        %v358 = vpop.permute.xlu0 %357
        %360 = vst.msk [vmem:[%s252] sm:$0xff] %vm354, %v358
        %361 = vrot.lane.b32.xlu0 %v350, 112
        %v362 = vpop.permute.xlu0 %361
        %364 = vst.msk [vmem:[%s259] sm:$0xff] %vm354, %v362
        %s365 = scalar_lea.vmem %s1, 32
        %v366 = vld [vmem:[%s365] sm:$0xff]
        %v367 = vld [vmem:[%s365 + $0x8] sm:$0xff]
        %v368 = vld [vmem:[%s365 + $0x10] sm:$0xff]
        %v369 = vld [vmem:[%s365 + $0x18] sm:$0xff]
        %s370 = scalar_lea.vmem %s2, 1
        %v371 = vld [vmem:[%s370] sm:$0x1]
        %v373 = vlaneseq
        %v374 = vshrl.u32 %v373, 7
        %v375 = vsub.s32 0, %v374
        %v376 = vrot.slane %v371, %v375
        %378 = vmatprep.subr.mxu0 0.0
        %379 = vmatpush1.msra.mxu0 %v366
        %380 = vmatprep.subr.mxu0 0.0
        %381 = vmatpush1.msra.mxu0 %v367
        %382 = vmatprep.subr.mxu0 0.0
        %383 = vmatpush1.msra.mxu0 %v368
        %384 = vmatprep.subr.mxu0 0.0
        %385 = vmatpush1.msra.mxu0 %v369
        %386 = vmatprep.subr.mxu0 0.0
        %387 = vmatpush1.msra.mxu0 0.0
        %388 = vmatprep.subr.mxu0 0.0
        %389 = vmatpush1.msra.mxu0 0.0
        %390 = vmatprep.subr.mxu0 0.0
        %391 = vmatpush1.msra.mxu0 0.0
        %392 = vmatprep.subr.mxu0 0.0
        %393 = vmatpush1.msra.mxu0 0.0
        %394 = vmatprep.subr.mxu0 0.0
        %395 = vmatpush1.msra.mxu0 0.0
        %396 = vmatprep.subr.mxu0 0.0
        %397 = vmatpush1.msra.mxu0 0.0
        %398 = vmatprep.subr.mxu0 0.0
        %399 = vmatpush1.msra.mxu0 0.0
        %400 = vmatprep.subr.mxu0 0.0
        %401 = vmatpush1.msra.mxu0 0.0
        %402 = vmatprep.subr.mxu0 0.0
        %403 = vmatpush1.msra.mxu0 0.0
        %404 = vmatprep.subr.mxu0 0.0
        %405 = vmatpush1.msra.mxu0 0.0
        %406 = vmatprep.subr.mxu0 0.0
        %407 = vmatpush1.msra.mxu0 0.0
        %408 = vmatprep.subr.mxu0 0.0
        %409 = vmatpush1.msra.mxu0 0.0
        %410 = vmatprep.subr.mxu0 0.0
        %411 = vmatpush1.msra.mxu0 0.0
        %412 = vmatprep.subr.mxu0 0.0
        %413 = vmatpush1.msra.mxu0 0.0
        %414 = vmatprep.subr.mxu0 0.0
        %415 = vmatpush1.msra.mxu0 0.0
        %416 = vmatprep.subr.mxu0 0.0
        %417 = vmatpush1.msra.mxu0 0.0
        %418 = vmatprep.subr.mxu0 0.0
        %419 = vmatpush1.msra.mxu0 0.0
        %420 = vmatprep.subr.mxu0 0.0
        %421 = vmatpush1.msra.mxu0 0.0
        %422 = vmatprep.subr.mxu0 0.0
        %423 = vmatpush1.msra.mxu0 0.0
        %424 = vmatprep.subr.mxu0 0.0
        %425 = vmatpush1.msra.mxu0 0.0
        %426 = vmatprep.subr.mxu0 0.0
        %427 = vmatpush1.msra.mxu0 0.0
        %428 = vmatprep.subr.mxu0 0.0
        %429 = vmatpush1.msra.mxu0 0.0
        %430 = vmatprep.subr.mxu0 0.0
        %431 = vmatpush1.msra.mxu0 0.0
        %432 = vmatprep.subr.mxu0 0.0
        %433 = vmatpush1.msra.mxu0 0.0
        %434 = vmatprep.subr.mxu0 0.0
        %435 = vmatpush1.msra.mxu0 0.0
        %436 = vmatprep.subr.mxu0 0.0
        %437 = vmatpush1.msra.mxu0 0.0
        %438 = vmatprep.subr.mxu0 0.0
        %439 = vmatpush1.msra.mxu0 0.0
        %440 = vmatprep.subr.mxu0 0.0
        %441 = vmatpush1.msra.mxu0 0.0
        %442 = vmatprep.mubr.f32.mxu0 0.0
        %443 = vmatmul.mubr.f32.gmra.mrb[0].mxu0 %v281
        %v444 = vpop.f32.mrb[0].mxu0
        %v445 = vadd.f32 %v376, %v444
        %v446 = vpop.f32.mrb[0].mxu0
        %447 = vdwg.mxu0
        %v448 = vmul.f32 %v445, 0.35355338
        %s449 = scalar_lea.vmem %s245, 8 [#allocation2]
        %450 = vst.msk [vmem:[%s449] sm:$0xff] %vm354, %v448
        %452 = vrot.lane.b32.xlu0 %v445, 120
        %v453 = vpop.permute.xlu0 %452
        %s455 = scalar_lea.vmem %s252, 8 [#allocation4]
        %456 = vst.msk [vmem:[%s455] sm:$0xff] %vm354, %v453
        %457 = vrot.lane.b32.xlu0 %v445, 112
        %v458 = vpop.permute.xlu0 %457
        %s460 = scalar_lea.vmem %s259, 8 [#allocation6]
        %461 = vst.msk [vmem:[%s460] sm:$0xff] %vm354, %v458
        %s462 = scalar_lea.vmem %s1, 64
        %v463 = vld [vmem:[%s462] sm:$0xff]
        %v464 = vld [vmem:[%s462 + $0x8] sm:$0xff]
        %v465 = vld [vmem:[%s462 + $0x10] sm:$0xff]
        %v466 = vld [vmem:[%s462 + $0x18] sm:$0xff]
        %s467 = scalar_lea.vmem %s2, 2
        %v468 = vld [vmem:[%s467] sm:$0x1]
        %v470 = vlaneseq
        %v471 = vshrl.u32 %v470, 7
        %v472 = vsub.s32 0, %v471
        %v473 = vrot.slane %v468, %v472
        %475 = vmatprep.subr.mxu0 0.0
        %476 = vmatpush1.msra.mxu0 %v463
        %477 = vmatprep.subr.mxu0 0.0
        %478 = vmatpush1.msra.mxu0 %v464
        %479 = vmatprep.subr.mxu0 0.0
        %480 = vmatpush1.msra.mxu0 %v465
        %481 = vmatprep.subr.mxu0 0.0
        %482 = vmatpush1.msra.mxu0 %v466
        %483 = vmatprep.subr.mxu0 0.0
        %484 = vmatpush1.msra.mxu0 0.0
        %485 = vmatprep.subr.mxu0 0.0
        %486 = vmatpush1.msra.mxu0 0.0
        %487 = vmatprep.subr.mxu0 0.0
        %488 = vmatpush1.msra.mxu0 0.0
        %489 = vmatprep.subr.mxu0 0.0
        %490 = vmatpush1.msra.mxu0 0.0
        %491 = vmatprep.subr.mxu0 0.0
        %492 = vmatpush1.msra.mxu0 0.0
        %493 = vmatprep.subr.mxu0 0.0
        %494 = vmatpush1.msra.mxu0 0.0
        %495 = vmatprep.subr.mxu0 0.0
        %496 = vmatpush1.msra.mxu0 0.0
        %497 = vmatprep.subr.mxu0 0.0
        %498 = vmatpush1.msra.mxu0 0.0
        %499 = vmatprep.subr.mxu0 0.0
        %500 = vmatpush1.msra.mxu0 0.0
        %501 = vmatprep.subr.mxu0 0.0
        %502 = vmatpush1.msra.mxu0 0.0
        %503 = vmatprep.subr.mxu0 0.0
        %504 = vmatpush1.msra.mxu0 0.0
        %505 = vmatprep.subr.mxu0 0.0
        %506 = vmatpush1.msra.mxu0 0.0
        %507 = vmatprep.subr.mxu0 0.0
        %508 = vmatpush1.msra.mxu0 0.0
        %509 = vmatprep.subr.mxu0 0.0
        %510 = vmatpush1.msra.mxu0 0.0
        %511 = vmatprep.subr.mxu0 0.0
        %512 = vmatpush1.msra.mxu0 0.0
        %513 = vmatprep.subr.mxu0 0.0
        %514 = vmatpush1.msra.mxu0 0.0
        %515 = vmatprep.subr.mxu0 0.0
        %516 = vmatpush1.msra.mxu0 0.0
        %517 = vmatprep.subr.mxu0 0.0
        %518 = vmatpush1.msra.mxu0 0.0
        %519 = vmatprep.subr.mxu0 0.0
        %520 = vmatpush1.msra.mxu0 0.0
        %521 = vmatprep.subr.mxu0 0.0
        %522 = vmatpush1.msra.mxu0 0.0
        %523 = vmatprep.subr.mxu0 0.0
        %524 = vmatpush1.msra.mxu0 0.0
        %525 = vmatprep.subr.mxu0 0.0
        %526 = vmatpush1.msra.mxu0 0.0
        %527 = vmatprep.subr.mxu0 0.0
        %528 = vmatpush1.msra.mxu0 0.0
        %529 = vmatprep.subr.mxu0 0.0
        %530 = vmatpush1.msra.mxu0 0.0
        %531 = vmatprep.subr.mxu0 0.0
        %532 = vmatpush1.msra.mxu0 0.0
        %533 = vmatprep.subr.mxu0 0.0
        %534 = vmatpush1.msra.mxu0 0.0
        %535 = vmatprep.subr.mxu0 0.0
        %536 = vmatpush1.msra.mxu0 0.0
        %537 = vmatprep.subr.mxu0 0.0
        %538 = vmatpush1.msra.mxu0 0.0
        %539 = vmatprep.mubr.f32.mxu0 0.0
        %540 = vmatmul.mubr.f32.gmra.mrb[0].mxu0 %v281
        %v541 = vpop.f32.mrb[0].mxu0
        %v542 = vadd.f32 %v473, %v541
        %v543 = vpop.f32.mrb[0].mxu0
        %544 = vdwg.mxu0
        %v545 = vmul.f32 %v542, 0.35355338
        %s546 = scalar_lea.vmem %s245, 16 [#allocation2]
        %547 = vst.msk [vmem:[%s546] sm:$0xff] %vm354, %v545
        %549 = vrot.lane.b32.xlu0 %v542, 120
        %v550 = vpop.permute.xlu0 %549
        %s552 = scalar_lea.vmem %s252, 16 [#allocation4]
        %553 = vst.msk [vmem:[%s552] sm:$0xff] %vm354, %v550
        %554 = vrot.lane.b32.xlu0 %v542, 112
        %v555 = vpop.permute.xlu0 %554
        %s557 = scalar_lea.vmem %s259, 16 [#allocation6]
        %558 = vst.msk [vmem:[%s557] sm:$0xff] %vm354, %v555
        %s559 = scalar_lea.vmem %s1, 96
        %v560 = vld [vmem:[%s559] sm:$0xff]
        %v561 = vld [vmem:[%s559 + $0x8] sm:$0xff]
        %v562 = vld [vmem:[%s559 + $0x10] sm:$0xff]
        %v563 = vld [vmem:[%s559 + $0x18] sm:$0xff]
        %s564 = scalar_lea.vmem %s2, 3
        %v565 = vld [vmem:[%s564] sm:$0x1]
        %v567 = vlaneseq
        %v568 = vshrl.u32 %v567, 7
        %v569 = vsub.s32 0, %v568
        %v570 = vrot.slane %v565, %v569
        %572 = vmatprep.subr.mxu0 0.0
        %573 = vmatpush1.msra.mxu0 %v560
        %574 = vmatprep.subr.mxu0 0.0
        %575 = vmatpush1.msra.mxu0 %v561
        %576 = vmatprep.subr.mxu0 0.0
        %577 = vmatpush1.msra.mxu0 %v562
        %578 = vmatprep.subr.mxu0 0.0
        %579 = vmatpush1.msra.mxu0 %v563
        %580 = vmatprep.subr.mxu0 0.0
        %581 = vmatpush1.msra.mxu0 0.0
        %582 = vmatprep.subr.mxu0 0.0
        %583 = vmatpush1.msra.mxu0 0.0
        %584 = vmatprep.subr.mxu0 0.0
        %585 = vmatpush1.msra.mxu0 0.0
        %586 = vmatprep.subr.mxu0 0.0
        %587 = vmatpush1.msra.mxu0 0.0
        %588 = vmatprep.subr.mxu0 0.0
        %589 = vmatpush1.msra.mxu0 0.0
        %590 = vmatprep.subr.mxu0 0.0
        %591 = vmatpush1.msra.mxu0 0.0
        %592 = vmatprep.subr.mxu0 0.0
        %593 = vmatpush1.msra.mxu0 0.0
        %594 = vmatprep.subr.mxu0 0.0
        %595 = vmatpush1.msra.mxu0 0.0
        %596 = vmatprep.subr.mxu0 0.0
        %597 = vmatpush1.msra.mxu0 0.0
        %598 = vmatprep.subr.mxu0 0.0
        %599 = vmatpush1.msra.mxu0 0.0
        %600 = vmatprep.subr.mxu0 0.0
        %601 = vmatpush1.msra.mxu0 0.0
        %602 = vmatprep.subr.mxu0 0.0
        %603 = vmatpush1.msra.mxu0 0.0
        %604 = vmatprep.subr.mxu0 0.0
        %605 = vmatpush1.msra.mxu0 0.0
        %606 = vmatprep.subr.mxu0 0.0
        %607 = vmatpush1.msra.mxu0 0.0
        %608 = vmatprep.subr.mxu0 0.0
        %609 = vmatpush1.msra.mxu0 0.0
        %610 = vmatprep.subr.mxu0 0.0
        %611 = vmatpush1.msra.mxu0 0.0
        %612 = vmatprep.subr.mxu0 0.0
        %613 = vmatpush1.msra.mxu0 0.0
        %614 = vmatprep.subr.mxu0 0.0
        %615 = vmatpush1.msra.mxu0 0.0
        %616 = vmatprep.subr.mxu0 0.0
        %617 = vmatpush1.msra.mxu0 0.0
        %618 = vmatprep.subr.mxu0 0.0
        %619 = vmatpush1.msra.mxu0 0.0
        %620 = vmatprep.subr.mxu0 0.0
        %621 = vmatpush1.msra.mxu0 0.0
        %622 = vmatprep.subr.mxu0 0.0
        %623 = vmatpush1.msra.mxu0 0.0
        %624 = vmatprep.subr.mxu0 0.0
        %625 = vmatpush1.msra.mxu0 0.0
        %626 = vmatprep.subr.mxu0 0.0
        %627 = vmatpush1.msra.mxu0 0.0
        %628 = vmatprep.subr.mxu0 0.0
        %629 = vmatpush1.msra.mxu0 0.0
        %630 = vmatprep.subr.mxu0 0.0
        %631 = vmatpush1.msra.mxu0 0.0
        %632 = vmatprep.subr.mxu0 0.0
        %633 = vmatpush1.msra.mxu0 0.0
        %634 = vmatprep.subr.mxu0 0.0
        %635 = vmatpush1.msra.mxu0 0.0
        %636 = vmatprep.mubr.f32.mxu0 0.0
        %637 = vmatmul.mubr.f32.gmra.mrb[0].mxu0 %v281
        %v638 = vpop.f32.mrb[0].mxu0
        %v639 = vadd.f32 %v570, %v638
        %v640 = vpop.f32.mrb[0].mxu0
        %641 = vdwg.mxu0
        %v642 = vmul.f32 %v639, 0.35355338
        %s643 = scalar_lea.vmem %s245, 24 [#allocation2]
        %644 = vst.msk [vmem:[%s643] sm:$0xff] %vm354, %v642
        %646 = vrot.lane.b32.xlu0 %v639, 120
        %v647 = vpop.permute.xlu0 %646
        %s649 = scalar_lea.vmem %s252, 24 [#allocation4]
        %650 = vst.msk [vmem:[%s649] sm:$0xff] %vm354, %v647
        %651 = vrot.lane.b32.xlu0 %v639, 112
        %v652 = vpop.permute.xlu0 %651
        %s654 = scalar_lea.vmem %s259, 24 [#allocation6]
        %655 = vst.msk [vmem:[%s654] sm:$0xff] %vm354, %v652
        %s656 = sand.u32 %s115, 1
        %s657 = scalar_lea.sflag [#allocation3], %s656
        %s658 = sand.u32 %s115, 1
        %s659 = smul.addr %s658, 32
        %s660 = scalar_lea.vmem [#allocation2], %s659
        %s661 = sand.u32 %s23, 1
        %s662 = scalar_lea.sflag [#allocation5], %s661
        %s663 = sand.u32 %s143, 1
        %s664 = smul.addr %s663, 32
        %s665 = scalar_lea.vmem [#allocation4], %s664
        %s666 = sand.u32 %s23, 1
        %s667 = scalar_lea.sflag [#allocation5], %s666
        %s668 = sand.u32 %s171, 1
        %s669 = smul.addr %s668, 32
        %s670 = scalar_lea.vmem [#allocation6], %s669
        // Predicated region
        $region33: #{tpu_custom_call.1} parent=31 // pred_check
          %p671 = pneg %p125
        $region34: #{tpu_custom_call.1} parent=31 // pred_check_branch
          %673 = sbr.rel (%p671) target = $region36
        $region35: #{tpu_custom_call.1} parent=31 // pred_region
          %s675 = ssub.s32 512, 512
          %676 = vsyncadd %s657, %s675
          %s677 = smul.addr %s27, 4
          %s678 = sadd.s32 %s28, %s677
          %s679 = smul.addr %s678, 128
          %s680 = scalar_lea.hbm %s3, %s679
          %s681 = sshll.u32 %s660, 4
          %s682 = int_to_ptr.vmem [resolvable:$true] %s681
          %687 = dma.vmem_to_hbm [thread:$0]  %s682, 512, %s680, %s657, 128, 128, 8
        $region36: #{tpu_custom_call.1} parent=31 // pred_fallthru
          _
        // Predicated region
        $region37: #{tpu_custom_call.1} parent=31 // pred_check
          %p688 = pneg %p153
        $region38: #{tpu_custom_call.1} parent=31 // pred_check_branch
          %690 = sbr.rel (%p688) target = $region40
        $region39: #{tpu_custom_call.1} parent=31 // pred_region
          %s692 = ssub.s32 512, 512
          %693 = vsyncadd %s662, %s692
          %s694 = smul.addr %s27, 4
          %s695 = sadd.s32 %s28, %s694
          %s696 = smul.addr %s695, 128
          %s697 = scalar_lea.hbm %s4, %s696
          %s698 = sshll.u32 %s665, 4
          %s699 = int_to_ptr.vmem [resolvable:$true] %s698
          %704 = dma.vmem_to_hbm [thread:$0]  %s699, 512, %s697, %s662, 128, 128, 8
        $region40: #{tpu_custom_call.1} parent=31 // pred_fallthru
          _
        // Predicated region
        $region41: #{tpu_custom_call.1} parent=31 // pred_check
          %p705 = pneg %p181
        $region42: #{tpu_custom_call.1} parent=31 // pred_check_branch
          %707 = sbr.rel (%p705) target = $region44
        $region43: #{tpu_custom_call.1} parent=31 // pred_region
          %s709 = ssub.s32 512, 512
          %710 = vsyncadd %s667, %s709
          %s711 = smul.addr %s27, 4
          %s712 = sadd.s32 %s28, %s711
          %s713 = smul.addr %s712, 128
          %s714 = scalar_lea.hbm %s5, %s713
          %s715 = sshll.u32 %s670, 4
          %s716 = int_to_ptr.vmem [resolvable:$true] %s715
          %721 = dma.vmem_to_hbm [thread:$0]  %s716, 512, %s714, %s667, 128, 128, 8
        $region44: #{tpu_custom_call.1} parent=31 // pred_fallthru
          _
      $region32: #{tpu_custom_call.1} parent=5 // pred_fallthru
        _
      %p722 = scmp.le.s32.totalorder 2, %s18
      // Predicated region
      $region45: #{tpu_custom_call.1} parent=5 // pred_check
        %p723 = pneg %p722
      $region46: #{tpu_custom_call.1} parent=5 // pred_check_branch
        %725 = sbr.rel (%p723) target = $region48
      $region47: #{tpu_custom_call.1} parent=5 // pred_region
        %s726 = ssub.s32 %s18, 2
        // Predicated region
        $region49: #{tpu_custom_call.1} parent=47 // pred_check
          %p727 = pneg %p131
        $region50: #{tpu_custom_call.1} parent=47 // pred_check_branch
          %729 = sbr.rel (%p727) target = $region52
        $region51: #{tpu_custom_call.1} parent=47 // pred_region
          %s730 = sand.u32 %s116, 1
          %s731 = scalar_lea.sflag [#allocation3], %s730
          %s732 = sand.u32 %s116, 1
          %s733 = smul.addr %s732, 32
          %s734 = scalar_lea.vmem [#allocation2], %s733
          %735 = dma.done %s731, 512
        $region52: #{tpu_custom_call.1} parent=47 // pred_fallthru
          _
        // Predicated region
        $region53: #{tpu_custom_call.1} parent=47 // pred_check
          %p736 = pneg %p159
        $region54: #{tpu_custom_call.1} parent=47 // pred_check_branch
          %738 = sbr.rel (%p736) target = $region56
        $region55: #{tpu_custom_call.1} parent=47 // pred_region
          %s739 = sand.u32 %s24, 1
          %s740 = scalar_lea.sflag [#allocation5], %s739
          %s741 = sand.u32 %s144, 1
          %s742 = smul.addr %s741, 32
          %s743 = scalar_lea.vmem [#allocation4], %s742
          %744 = dma.done %s740, 512
        $region56: #{tpu_custom_call.1} parent=47 // pred_fallthru
          _
        // Predicated region
        $region57: #{tpu_custom_call.1} parent=47 // pred_check
          %p745 = pneg %p187
        $region58: #{tpu_custom_call.1} parent=47 // pred_check_branch
          %747 = sbr.rel (%p745) target = $region60
        $region59: #{tpu_custom_call.1} parent=47 // pred_region
          %s748 = sand.u32 %s24, 1
          %s749 = scalar_lea.sflag [#allocation5], %s748
          %s750 = sand.u32 %s172, 1
          %s751 = smul.addr %s750, 32
          %s752 = scalar_lea.vmem [#allocation6], %s751
          %753 = dma.done %s749, 512
        $region60: #{tpu_custom_call.1} parent=47 // pred_fallthru
          _
      $region48: #{tpu_custom_call.1} parent=5 // pred_fallthru
        _
    $region6: #{tpu_custom_call.1} parent=1 // loop_footer
      %s22 = sadd.s32 1, %s18
    $region7: #{tpu_custom_call.1} parent=1 // loop_footer_branch
      %17 = sbr.rel target = $region3
    $region8: #{tpu_custom_call.1} parent=1 // loop_exit
      _
    %754 = vsyncpa [#allocation3], 1
    %s755 = scalar_lea.sflag [#allocation3], 1
    %756 = vsyncpa %s755, 1
    %757 = vsyncpa [#allocation5], 1
    %s758 = scalar_lea.sflag [#allocation5], 1
    %759 = vsyncpa %s758, 1

</llo_original>
